<compile_context>
chip_gen: v7x
topology: tpu7x:2x2x1
jax: 0.10.0
libtpu: 0.0.40
codegen_flags: <defaults>
</compile_context>

<pallas_src>
import functools

import numpy as np
import jax
import jax.numpy as jnp
from jax.experimental import pallas as pl
from jax.experimental.pallas import tpu as pltpu


def _ce_body(logits_ref, target_ref, weight_ref, out_ref, n_rows, tile_n):
    # logits_ref: (TILE_N, C) native dtype VMEM
    # target_ref: (TILE_N, 1) int32       VMEM
    # weight_ref: (1, C)      float32     VMEM (resident across grid) or None
    # out_ref:    (1, 8, 128) float32     per-block partials
    i = pl.program_id(0)

    # Cast AFTER the DMA: HBM traffic stays in the input's native dtype.
    logits = logits_ref[...].astype(jnp.float32)               # (TILE_N, C)
    tgt = target_ref[...]                                       # (TILE_N, 1)
    tn, c = logits.shape

    # Row-validity mask for the ragged last block (no wrapper-side pad).
    row_ids = i * tile_n + jax.lax.broadcasted_iota(jnp.int32, (tn, 1), 0)
    row_valid = row_ids < n_rows                                # (TILE_N, 1)

    # Target mask via a (1, C) iota broadcast (TPU needs >=2D iota); no
    # materialized (TILE_N, C) int iota and no f32 one-hot.
    col_ids = jax.lax.broadcasted_iota(jnp.int32, (1, c), 1)    # (1, C)
    mask = col_ids == tgt                                       # (TILE_N, C)

    # Numerically stable per-row log-sum-exp; gather the target logit from
    # `shifted` so row_max cancels and never needs to be added back.
    row_max = jnp.max(logits, axis=1, keepdims=True)            # (TILE_N, 1)
    shifted = logits - row_max                                  # (TILE_N, C)
    lse_shifted = jnp.log(
        jnp.sum(jnp.exp(shifted), axis=1, keepdims=True))       # (TILE_N, 1)
    tgt_shifted = jnp.sum(jnp.where(mask, shifted, 0.0),
                          axis=1, keepdims=True)                # (TILE_N, 1)
    per_sample = lse_shifted - tgt_shifted                      # (TILE_N, 1)

    if weight_ref is None:
        w_i = jnp.ones_like(per_sample)                         # (TILE_N, 1)
    else:
        w_i = jnp.sum(jnp.where(mask, weight_ref[...], 0.0),
                      axis=1, keepdims=True)                    # (TILE_N, 1)

    # Zero invalid rows EXPLICITLY: garbage logits in the ragged tail can make
    # per_sample inf/NaN, so relying on w_i == 0 is unsafe (0 * inf = NaN).
    num = jnp.sum(jnp.where(row_valid, w_i * per_sample, 0.0))  # scalar
    den = jnp.sum(w_i * row_valid.astype(jnp.float32))          # scalar

    # Lane-dense full-block store: sublane 0 = num, sublane 1 = den.
    sub = jax.lax.broadcasted_iota(jnp.int32, (1, 8, 128), 1)
    out_ref[...] = jnp.where(sub == 0, num,
                             jnp.where(sub == 1, den, jnp.float32(0.0)))


def _ce_kernel_weighted(logits_ref, target_ref, weight_ref, out_ref, *,
                        n_rows, tile_n):
    _ce_body(logits_ref, target_ref, weight_ref, out_ref, n_rows, tile_n)


def _ce_kernel_unweighted(logits_ref, target_ref, out_ref, *, n_rows, tile_n):
    _ce_body(logits_ref, target_ref, None, out_ref, n_rows, tile_n)


def _round_up(x, m):
    return ((x + m - 1) // m) * m


def _vmem_budget_and_limit():
    """Generation-aware (budget_for_tiling, vmem_limit_bytes)."""
    try:
        cap = pltpu.get_tpu_info().vmem_capacity_bytes
    except Exception:
        cap = 64 * 1024 * 1024  # conservative default (v7x-sized)
    if cap >= 100 * 1024 * 1024:            # v5e / v6e: 128 MiB physical
        return 48 * 1024 * 1024, 96 * 1024 * 1024
    return 20 * 1024 * 1024, 40 * 1024 * 1024   # v7x: 64 MiB physical


def _choose_tile_n(n, c, itemsize, budget_bytes):
    """Largest batch tile whose double-buffered input block plus live f32
    temporaries fit the generation-aware VMEM budget.  Capped by bytes, not a
    hard row count, so small C can use 2k-4k row blocks."""
    # 2x buffered native-dtype input row + ~4 live f32 (TILE_N, C) temps
    # (cast logits, shifted, exp(shifted), masked select).
    per_row = 2 * c * itemsize + 4 * c * 4
    t = budget_bytes // max(per_row, 1)
    t = min(4096, (t // 8) * 8)
    t = max(t, 8)
    return min(t, _round_up(n, 8))


def make_per_cls_weights(cls_num_list, reweight_CE):
    """Deterministic re-creation of the module's __init__ parameter math."""
    if not reweight_CE:
        return None
    beta = 0.9999
    cls_num = np.asarray(cls_num_list, dtype=np.float64)
    effective_num = 1.0 - np.power(beta, cls_num)
    per_cls_weights = (1.0 - beta) / effective_num
    per_cls_weights = per_cls_weights / np.sum(per_cls_weights) * len(cls_num_list)
    return jnp.asarray(per_cls_weights, dtype=jnp.float32)


def cross_entropy_loss(output_logits, target, per_cls_weights=None, tile_n=None):
    """Pallas-backed equivalent of CrossEntropyLoss.forward."""
    n, c = output_logits.shape
    itemsize = jnp.dtype(output_logits.dtype).itemsize
    budget, vmem_limit = _vmem_budget_and_limit()
    if tile_n is None:
        tile_n = _choose_tile_n(n, c, itemsize, budget)
    tile_n = max(8, _round_up(min(tile_n, _round_up(n, 8)), 8))
    n_blocks = pl.cdiv(n, tile_n)   # no logits padding; ragged tail masked in-kernel

    target_2d = target.astype(jnp.int32).reshape(n, 1)

    in_specs = [
        pl.BlockSpec((tile_n, c), lambda i: (i, 0)),   # logits tile (native dtype)
        pl.BlockSpec((tile_n, 1), lambda i: (i, 0)),   # target tile
    ]
    args = [output_logits, target_2d]

    if per_cls_weights is None:
        kernel = functools.partial(_ce_kernel_unweighted,
                                   n_rows=n, tile_n=tile_n)
    else:
        w = per_cls_weights.astype(jnp.float32).reshape(1, c)
        in_specs.append(pl.BlockSpec((1, c), lambda i: (0, 0)))  # resident weights
        args.append(w)
        kernel = functools.partial(_ce_kernel_weighted,
                                   n_rows=n, tile_n=tile_n)

    grid_spec = pltpu.PrefetchScalarGridSpec(
        num_scalar_prefetch=0,
        grid=(n_blocks,),
        in_specs=in_specs,
        # Per-block partials: disjoint output blocks -> batch axis is truly
        # parallel (megacore-shardable on v7x), no scratch accumulators.
        out_specs=pl.BlockSpec((1, 8, 128), lambda i: (i, 0, 0)),
    )

    partials = pl.pallas_call(
        kernel,
        out_shape=jax.ShapeDtypeStruct((n_blocks, 8, 128), jnp.float32),
        grid_spec=grid_spec,
        compiler_params=pltpu.CompilerParams(
            dimension_semantics=("parallel",),
            vmem_limit_bytes=vmem_limit,
        ),
    )(*args)

    num_total = jnp.sum(partials[:, 0, 0])
    den_total = jnp.sum(partials[:, 1, 0])
    # PyTorch 'mean' reduction: divide by the sum of sample weights
    # (== number of samples when weight is None).
    return num_total / den_total


def _reference_ce(logits, target, weight=None):
    """Pure-JAX reference for sanity checking."""
    logits = logits.astype(jnp.float32)
    lse = jax.nn.logsumexp(logits, axis=1)
    tgt_logit = jnp.take_along_axis(logits, target[:, None].astype(jnp.int32),
                                    axis=1)[:, 0]
    per_sample = lse - tgt_logit
    if weight is None:
        return jnp.mean(per_sample)
    w_i = weight[target]
    return jnp.sum(w_i * per_sample) / jnp.sum(w_i)


if __name__ == "__main__":
    key = jax.random.PRNGKey(0)
    k1, k2, k3, k4 = jax.random.split(key, 4)

    # Case 1: plain cross entropy, f32, small shapes (N=8, C=16)
    N, C = 8, 16
    logits = jax.random.normal(k1, (N, C), dtype=jnp.float32)
    target = jax.random.randint(k2, (N,), 0, C, dtype=jnp.int32)
    loss_plain = cross_entropy_loss(logits, target, per_cls_weights=None)

    # Case 2: class-balanced re-weighted CE (reweight_CE=True)
    cls_num_list = [100, 60, 40, 20, 10, 8, 6, 5, 4, 3, 2, 2, 1, 1, 1, 1]
    w = make_per_cls_weights(cls_num_list, reweight_CE=True)
    loss_weighted = cross_entropy_loss(logits, target, per_cls_weights=w)

    # Case 3: bf16 logits (native-dtype path), multi-block grid with a ragged
    # last block (52 rows, TILE_N=16 -> 4 blocks, tail masked in-kernel).
    N3, C3 = 52, 128
    logits_bf16 = jax.random.normal(k3, (N3, C3), dtype=jnp.bfloat16)
    target3 = jax.random.randint(k4, (N3,), 0, C3, dtype=jnp.int32)
    loss_bf16 = cross_entropy_loss(logits_bf16, target3, per_cls_weights=None,
                                   tile_n=16)

    jax.block_until_ready(loss_plain)
    jax.block_until_ready(loss_weighted)
    jax.block_until_ready(loss_bf16)

    # sanity checks against pure-JAX references
    ref_plain = _reference_ce(logits, target, None)
    ref_weighted = _reference_ce(logits, target, w)
    ref_bf16 = _reference_ce(logits_bf16, target3, None)
    assert jnp.allclose(loss_plain, ref_plain, atol=1e-5), (loss_plain, ref_plain)
    assert jnp.allclose(loss_weighted, ref_weighted, atol=1e-5), (loss_weighted, ref_weighted)
    assert jnp.allclose(loss_bf16, ref_bf16, atol=1e-4, rtol=1e-4), (loss_bf16, ref_bf16)

    print("KERNEL_OK")
</pallas_src>

<mosaic_0001>
module attributes {stable_mosaic.version = 11 : i64} {
  func.func @_ce_kernel_unweighted(%arg0: i32, %arg1: memref<8x16xf32, #tpu.memory_space<vmem>>, %arg2: memref<8x1xi32, #tpu.memory_space<vmem>>, %arg3: memref<1x8x128xf32, #tpu.memory_space<vmem>>) attributes {dimension_semantics = [#tpu.dimension_semantics<parallel>], iteration_bounds = array<i64: 1>, scalar_prefetch = 0 : i64, scratch_operands = 0 : i64, tpu.core_type = #tpu.core_type<tc>, window_params = [{transform_indices = @transform_0, window_bounds = array<i64: 8, 16>}, {transform_indices = @transform_1, window_bounds = array<i64: 8, 1>}, {transform_indices = @transform_2, window_bounds = array<i64: 1, 8, 128>}]} {
    %c0 = arith.constant 0 : index
    %c0_0 = arith.constant 0 : index
    %0 = vector.load %arg1[%c0, %c0_0] : memref<8x16xf32, #tpu.memory_space<vmem>>, vector<8x16xf32>
    %c0_1 = arith.constant 0 : index
    %c0_2 = arith.constant 0 : index
    %1 = vector.load %arg2[%c0_1, %c0_2] : memref<8x1xi32, #tpu.memory_space<vmem>>, vector<8x1xi32>
    %c8_i32 = arith.constant 8 : i32
    %2 = arith.muli %arg0, %c8_i32 : i32
    %3 = tpu.iota {dimensions = array<i32: 0>} : vector<8x1xi32>
    %4 = vector.broadcast %2 : i32 to vector<8x1xi32>
    %5 = arith.addi %4, %3 : vector<8x1xi32>
    %c8_i32_3 = arith.constant 8 : i32
    %6 = vector.broadcast %c8_i32_3 : i32 to vector<8x1xi32>
    %7 = arith.cmpi slt, %5, %6 : vector<8x1xi32>
    %8 = tpu.iota {dimensions = array<i32: 1>} : vector<1x16xi32>
    %9 = vector.broadcast %8 : vector<1x16xi32> to vector<8x16xi32>
    %10 = vector.broadcast %1 : vector<8x1xi32> to vector<8x16xi32>
    %11 = arith.cmpi eq, %9, %10 : vector<8x16xi32>
    %cst = arith.constant dense<0xFF800000> : vector<8xf32>
    %12 = vector.multi_reduction <maximumf>, %0, %cst [1] : vector<8x16xf32> to vector<8xf32>
    %13 = vector.shape_cast %12 : vector<8xf32> to vector<8x1xf32>
    %14 = vector.broadcast %13 : vector<8x1xf32> to vector<8x16xf32>
    %15 = arith.subf %0, %14 : vector<8x16xf32>
    %16 = math.exp %15 : vector<8x16xf32>
    %cst_4 = arith.constant dense<0.000000e+00> : vector<8xf32>
    %17 = vector.multi_reduction <add>, %16, %cst_4 [1] : vector<8x16xf32> to vector<8xf32>
    %18 = vector.shape_cast %17 : vector<8xf32> to vector<8x1xf32>
    %19 = math.log %18 : vector<8x1xf32>
    %cst_5 = arith.constant 0.000000e+00 : f32
    %20 = vector.broadcast %cst_5 : f32 to vector<8x16xf32>
    %21 = arith.select %11, %15, %20 : vector<8x16xi1>, vector<8x16xf32>
    %cst_6 = arith.constant dense<0.000000e+00> : vector<8xf32>
    %22 = vector.multi_reduction <add>, %21, %cst_6 [1] : vector<8x16xf32> to vector<8xf32>
    %23 = vector.shape_cast %22 : vector<8xf32> to vector<8x1xf32>
    %24 = arith.subf %19, %23 : vector<8x1xf32>
    %cst_7 = arith.constant 1.000000e+00 : f32
    %25 = vector.broadcast %cst_7 : f32 to vector<8x1xf32>
    %26 = arith.mulf %25, %24 : vector<8x1xf32>
    %cst_8 = arith.constant 0.000000e+00 : f32
    %27 = vector.broadcast %cst_8 : f32 to vector<8x1xf32>
    %28 = arith.select %7, %26, %27 : vector<8x1xi1>, vector<8x1xf32>
    %29 = vector.shape_cast %28 : vector<8x1xf32> to vector<1x8x1xf32>
    %cst_9 = arith.constant dense<0.000000e+00> : vector<1xf32>
    %30 = vector.multi_reduction <add>, %29, %cst_9 [1, 2] : vector<1x8x1xf32> to vector<1xf32>
    %31 = vector.shape_cast %30 : vector<1xf32> to vector<1x1x1xf32>
    %32 = vector.extract %31[0, 0, 0] : f32 from vector<1x1x1xf32>
    %33 = arith.extui %7 : vector<8x1xi1> to vector<8x1xi32>
    %34 = arith.sitofp %33 : vector<8x1xi32> to vector<8x1xf32>
    %35 = arith.mulf %25, %34 : vector<8x1xf32>
    %36 = vector.shape_cast %35 : vector<8x1xf32> to vector<1x8x1xf32>
    %cst_10 = arith.constant dense<0.000000e+00> : vector<1xf32>
    %37 = vector.multi_reduction <add>, %36, %cst_10 [1, 2] : vector<1x8x1xf32> to vector<1xf32>
    %38 = vector.shape_cast %37 : vector<1xf32> to vector<1x1x1xf32>
    %39 = vector.extract %38[0, 0, 0] : f32 from vector<1x1x1xf32>
    %40 = tpu.iota {dimensions = array<i32: 1>} : vector<1x8x128xi32>
    %c0_i32 = arith.constant 0 : i32
    %41 = vector.broadcast %c0_i32 : i32 to vector<1x8x128xi32>
    %42 = arith.cmpi eq, %40, %41 : vector<1x8x128xi32>
    %c1_i32 = arith.constant 1 : i32
    %43 = vector.broadcast %c1_i32 : i32 to vector<1x8x128xi32>
    %44 = arith.cmpi eq, %40, %43 : vector<1x8x128xi32>
    %cst_11 = arith.constant 0.000000e+00 : f32
    %45 = vector.broadcast %39 : f32 to vector<1x8x128xf32>
    %46 = vector.broadcast %cst_11 : f32 to vector<1x8x128xf32>
    %47 = arith.select %44, %45, %46 : vector<1x8x128xi1>, vector<1x8x128xf32>
    %48 = vector.broadcast %32 : f32 to vector<1x8x128xf32>
    %49 = arith.select %42, %48, %47 : vector<1x8x128xi1>, vector<1x8x128xf32>
    %c0_12 = arith.constant 0 : index
    %c0_13 = arith.constant 0 : index
    %c0_14 = arith.constant 0 : index
    %50 = vector.load %arg3[%c0_12, %c0_13, %c0_14] : memref<1x8x128xf32, #tpu.memory_space<vmem>>, vector<1x8x128xf32>
    tpu.vector_store %arg3[%c0_12, %c0_13, %c0_14], %49 {strides = array<i32>} : memref<1x8x128xf32, #tpu.memory_space<vmem>>, vector<1x8x128xf32>,
    return
  }
  func.func @transform_0(%arg0: i32) -> (i32, i32) {
    %c0_i32 = arith.constant 0 : i32
    %c0_i32_0 = arith.constant 0 : i32
    return %arg0, %c0_i32 : i32, i32
  }
  func.func @transform_1(%arg0: i32) -> (i32, i32) {
    %c0_i32 = arith.constant 0 : i32
    %c0_i32_0 = arith.constant 0 : i32
    return %arg0, %c0_i32 : i32, i32
  }
  func.func @transform_2(%arg0: i32) -> (i32, i32, i32) {
    %c0_i32 = arith.constant 0 : i32
    %c0_i32_0 = arith.constant 0 : i32
    %c0_i32_1 = arith.constant 0 : i32
    return %arg0, %c0_i32, %c0_i32_0 : i32, i32, i32
  }
}

</mosaic_0001>

<llo_original>
// kernel: tpu_custom_call.1
$region0: #{tpu_custom_call.1}
  #allocation0 [shape = 'u32[]', space=smem, size = 0x4, offset = 0x4, fixed_abs, tag = 'smem constant byte address 0x4 - core index']
  #allocation1 [shape = 'u32[144,128]{1,0:T(1,128)}', space=vmem, size = 0x12000, scoped, tag = 'internal scratch']
  %s0 = inlined_call_operand.vmem [shape: f32[8,16], index: 0, kind: input, shape index: {}]
  %s1 = inlined_call_operand.vmem [shape: s32[8,1], index: 1, kind: input, shape index: {}]
  %s2 = inlined_call_operand.hbm [shape: f32[1,8,128], index: 2, kind: output, shape index: {}]
  %s3 = sld [smem:[#allocation0]]
  $region18: #{tpu_custom_call.1} parent=0
    _
  %s5 = ssub.s32 1, %s3
  %s6 = scalar_select 0, %s5, %s3
  $region1: #{tpu_custom_call.1} parent=0
    #allocation2 [shape = 'u8[4096]{0}', space=vmem, size = 0x1000, scoped, tag = 'output window, operand 0, single buffered']
    #allocation3 [shape = 's32[1]{0}', space=sflag, size = 0x4, scoped, tag = 'scoped memory for tpu_custom_call.1']
    %7 = vsyncpa [#allocation3], 0
    // Predicated region
    $region2: #{tpu_custom_call.1} parent=1 // pred_check
      _
    $region3: #{tpu_custom_call.1} parent=1 // pred_check_branch
      %9 = sbr.rel (0) target = $region5
    $region4: #{tpu_custom_call.1} parent=1 // pred_region
      _
    $region5: #{tpu_custom_call.1} parent=1 // pred_fallthru
      _
    // Predicated region
    $region6: #{tpu_custom_call.1} parent=1 // pred_check
      _
    $region7: #{tpu_custom_call.1} parent=1 // pred_check_branch
      %11 = sbr.rel (0) target = $region9
    $region8: #{tpu_custom_call.1} parent=1 // pred_region
      _
    $region9: #{tpu_custom_call.1} parent=1 // pred_fallthru
      _
    %v12 = vld [vmem:[%s0] sm:$0xff]
    %v13 = vld [vmem:[%s1] sm:$0xff]
    %s14 = smul.u32 0, 8
    %v15 = vlaneseq
    %v16 = vshrl.u32 %v15, 7
    %v17 = vstv %s14
    %v18 = vadd.s32 %v17, %v16
    %vm19 = vcmp.lt.s32.totalorder %v18, 8
    %v20 = vlaneseq
    %v21 = vand.u32 %v20, 127
    %22 = vset.pattern.permute.xlu0 0
    %23 = vperm.xlu0 %22, %v13
    %v24 = vpop.permute.xlu0 %23
    %vm25 = vcmp.eq.s32.totalorder %v21, %v24
    %vm26 = vcmask 130048
    %v27 = vsel %vm26, %v12, -inf
    %28 = vmax.xlane.f32.xlu0 %v27
    %v29 = vpop.xlane.xlu0 %28
    %v30 = vsub.f32 %v12, %v29
    %v31 = vmul.f32 %v30, 1.442695
    %v32 = vpow.pop %v31
    %v33 = vsel %vm26, %v32, 0.0
    %34 = vadd.xlane.f32.xlu0 %v33
    %v35 = vpop.xlane.xlu0 %34
    %v36 = vlog2.pop %v35
    %v37 = vmul.f32 %v36, 0.6931472
    %v38 = vsel %vm25, %v30, 0.0
    %v39 = vsel %vm26, %v38, 0.0
    %40 = vadd.xlane.f32.xlu0 %v39
    %v41 = vpop.xlane.xlu0 %40
    %v42 = vsub.f32 %v37, %v41
    %v43 = vsel %vm19, %v42, 0.0
    %vm44 = vcmask 7168
    %v45 = vsel %vm44, %v43, 0.0
    %46 = vadd.xlane.f32.xlu0 %v45
    %v47 = vpop.xlane.xlu0 %46
    %v48 = vrot.slane %v47, 4
    %v49 = vadd.f32 %v47, %v48
    %v50 = vrot.slane %v49, 2
    %v51 = vadd.f32 %v49, %v50
    %v52 = vrot.slane %v51, 1
    %v53 = vadd.f32 %v51, %v52
    %s54 = vtos %v53
    %v55 = vsel %vm19, 1, 0
    %v56 = vcvt.s32.f32 %v55
    %v57 = vsel %vm44, %v56, 0.0
    %58 = vadd.xlane.f32.xlu0 %v57
    %v59 = vpop.xlane.xlu0 %58
    %v60 = vrot.slane %v59, 4
    %v61 = vadd.f32 %v59, %v60
    %v62 = vrot.slane %v61, 2
    %v63 = vadd.f32 %v61, %v62
    %v64 = vrot.slane %v63, 1
    %v65 = vadd.f32 %v63, %v64
    %s66 = vtos %v65
    %vm67 = vcmp.eq.s32.totalorder %v16, 0
    %vm68 = vcmp.eq.s32.totalorder %v16, 1
    %v69 = vstv %s66
    %v70 = vsel %vm68, %v69, 0.0
    %v71 = vstv %s54
    %v72 = vsel %vm67, %v71, %v70
    %73 = vst [vmem:[#allocation2] sm:$0xff] %v72
    // Predicated region
    $region10: #{tpu_custom_call.1} parent=1 // pred_check
      _
    $region11: #{tpu_custom_call.1} parent=1 // pred_check_branch
      %75 = sbr.rel (0) target = $region13
    $region12: #{tpu_custom_call.1} parent=1 // pred_region
      %s77 = ssub.s32 128, 128
      %78 = vsyncadd [#allocation3], %s77
      %s80 = sshll.u32 [#allocation2], 4
      %s81 = int_to_ptr.vmem [resolvable:$true] %s80
      %83 = dma.vmem_to_hbm [thread:$0]  %s81, 128, %s2, [#allocation3]
    $region13: #{tpu_custom_call.1} parent=1 // pred_fallthru
      _
    // Predicated region
    $region14: #{tpu_custom_call.1} parent=1 // pred_check
      _
    $region15: #{tpu_custom_call.1} parent=1 // pred_check_branch
      %85 = sbr.rel (0) target = $region17
    $region16: #{tpu_custom_call.1} parent=1 // pred_region
      %86 = dma.done [#allocation3], 128
    $region17: #{tpu_custom_call.1} parent=1 // pred_fallthru
      _
    %87 = vsyncpa [#allocation3], 1

</llo_original>
